<compile_context>
chip_gen: v7x
topology: tpu7x:2x2x1
jax: 0.10.0
libtpu: 0.0.40
codegen_flags: <defaults>
</compile_context>

<pallas_src>
import functools

import jax
import jax.numpy as jnp
from jax.experimental import pallas as pl
from jax.experimental.pallas import tpu as pltpu


def _round_up(x, m):
    return (x + m - 1) // m * m


# ---------------------------------------------------------------------------
# Pallas kernels
# ---------------------------------------------------------------------------
def _conv_mm_kernel(w_ref, p_ref, o_ref, *, act):
    """One M-tile of conv-as-matmul: (Cout, K) @ (K, TILE_M) + fused activation.

    Output last axis is TILE_M (multiple of 128) -> lane-dense stores.
    """
    acc = jnp.dot(w_ref[...], p_ref[...], preferred_element_type=jnp.float32)
    if act == "leaky_relu":
        acc = jnp.where(acc >= 0.0, acc, 0.2 * acc)
    elif act == "sigmoid":
        # Numerically stable sigmoid: exp of a non-positive argument only.
        neg = jnp.where(acc >= 0.0, -acc, acc)
        z = jnp.exp(neg)                     # in (0, 1]
        r = 1.0 / (1.0 + z)
        acc = jnp.where(acc >= 0.0, r, z * r)
    o_ref[...] = acc.astype(o_ref.dtype)


def _batchnorm_kernel(x_ref, o_ref, *, eps, inv_m):
    """Training-mode BatchNorm2d (gamma=1, beta=0) on a (C, M) block.

    Reduction runs along the lane axis (M); one pass for sum and sum-of-squares.
    """
    x = x_ref[...].astype(jnp.float32)                       # (C, M)
    s = jnp.sum(x, axis=1, keepdims=True)
    ss = jnp.sum(x * x, axis=1, keepdims=True)
    mean = s * inv_m
    var = jnp.maximum(ss * inv_m - mean * mean, 0.0)         # biased variance
    o_ref[...] = ((x - mean) * jax.lax.rsqrt(var + eps)).astype(o_ref.dtype)


# ---------------------------------------------------------------------------
# Layer wrappers (glue: padding / tap extraction / reshapes stay in plain JAX)
# ---------------------------------------------------------------------------
def conv3x3_s2_act(x_cnhw, w_oihw, act, *, tile_m_cap=512):
    """3x3 conv, stride 2, padding 1, no bias, fused activation.

    Input  : (Cin, N, H, W)   channel-major activation
    Weight : (Cout, Cin, 3, 3) PyTorch OIHW
    Output : (Cout, N, Ho, Wo)
    """
    Cin, N, H, W = x_cnhw.shape
    Cout = w_oihw.shape[0]
    Ho = (H + 2 - 3) // 2 + 1
    Wo = (W + 2 - 3) // 2 + 1
    M = N * Ho * Wo
    K = 9 * Cin

    # im2col, transposed: patches_t[(kh*3+kw)*Cin + ci, n*Ho*Wo + ho*Wo + wo]
    xp = jnp.pad(x_cnhw, ((0, 0), (0, 0), (1, 1), (1, 1)))
    taps = jnp.stack(
        [xp[:, :, kh:kh + 2 * Ho:2, kw:kw + 2 * Wo:2]
         for kh in range(3) for kw in range(3)],
        axis=0,
    )                                                        # (9, Cin, N, Ho, Wo)
    patches_t = taps.reshape(K, M)

    # Lane-friendly M padding + tile size (multiple of 128, capped for VMEM).
    m_pad = _round_up(M, 128)
    tile_m = min(tile_m_cap, m_pad)
    m_pad = _round_up(m_pad, tile_m)
    if m_pad != M:
        patches_t = jnp.pad(patches_t, ((0, 0), (0, m_pad - M)))

    # bf16 operands, f32 MXU accumulation.
    patches_t = patches_t.astype(jnp.bfloat16)
    w_mat = jnp.transpose(w_oihw, (0, 2, 3, 1)).reshape(Cout, K).astype(jnp.bfloat16)

    grid = (m_pad // tile_m,)
    out = pl.pallas_call(
        functools.partial(_conv_mm_kernel, act=act),
        grid=grid,
        in_specs=[
            pl.BlockSpec((Cout, K), lambda i: (0, 0)),       # weight, VMEM-resident
            pl.BlockSpec((K, tile_m), lambda i: (0, i)),     # patch tile
        ],
        out_specs=pl.BlockSpec((Cout, tile_m), lambda i: (0, i)),
        out_shape=jax.ShapeDtypeStruct((Cout, m_pad), jnp.float32),
        compiler_params=pltpu.CompilerParams(
            dimension_semantics=("parallel",)),
    )(w_mat, patches_t)

    out = out[:, :M]
    return out.reshape(Cout, N, Ho, Wo)


def batchnorm2d(x_cnhw, eps=1e-5):
    """Training-mode BatchNorm2d over (N, H, W) per channel; (C, N, H, W) layout."""
    C, N, H, W = x_cnhw.shape
    M = N * H * W
    x2 = x_cnhw.reshape(C, M)
    out = pl.pallas_call(
        functools.partial(_batchnorm_kernel, eps=eps, inv_m=1.0 / M),
        grid=(1,),
        in_specs=[pl.BlockSpec((C, M), lambda i: (0, 0))],
        out_specs=pl.BlockSpec((C, M), lambda i: (0, 0)),
        out_shape=jax.ShapeDtypeStruct((C, M), x_cnhw.dtype),
    )(x2)
    return out.reshape(C, N, H, W)


# ---------------------------------------------------------------------------
# Full model
# ---------------------------------------------------------------------------
def init_params(hidden_channels, key):
    """Deterministic synthetic conv weights, PyTorch OIHW layout, bias=False."""
    chans = list(hidden_channels)
    shapes = [(chans[i + 1], chans[i], 3, 3) for i in range(len(chans) - 1)]
    shapes.append((1, chans[-1], 3, 3))  # final Conv2d(hc[-1] -> 1)
    keys = jax.random.split(key, len(shapes))
    return [0.1 * jax.random.normal(k, s, dtype=jnp.float32)
            for k, s in zip(keys, shapes)]


def discriminator_forward(x_nchw, weights):
    # NCHW -> channel-major (C, N, H, W); kept throughout so conv outputs are
    # lane-dense (Cout, M) with no per-layer transposes.
    x = jnp.transpose(x_nchw, (1, 0, 2, 3))
    x = conv3x3_s2_act(x, weights[0], "leaky_relu")          # first conv + LeakyReLU
    for w in weights[1:-1]:                                   # discriminator blocks
        x = conv3x3_s2_act(x, w, "leaky_relu")
        x = batchnorm2d(x)
    x = conv3x3_s2_act(x, weights[-1], "sigmoid")            # final conv + Sigmoid
    out = jnp.transpose(x, (1, 0, 2, 3))                      # (N, 1, Ho, Wo)
    out = jnp.squeeze(out)                                    # torch .squeeze()
    return jnp.expand_dims(out, 1)                            # .unsqueeze(1)


if __name__ == "__main__":
    hidden_channels = [4, 8, 16]
    key = jax.random.PRNGKey(0)
    kx, kw = jax.random.split(key)

    x = jax.random.normal(kx, (2, 4, 16, 16), dtype=jnp.float32)  # NCHW like PyTorch
    weights = init_params(hidden_channels, kw)

    out = jax.jit(discriminator_forward)(x, weights)
    jax.block_until_ready(out)

    # 16 -> 8 -> 4 -> 2 spatially; (2, 1, 2, 2) after squeeze().unsqueeze(1)
    assert out.shape == (2, 1, 2, 2), out.shape
    assert bool(jnp.all((out >= 0.0) & (out <= 1.0)))  # sigmoid output range
    print("KERNEL_OK")
</pallas_src>

<mosaic_0001>
module attributes {stable_mosaic.version = 11 : i64} {
  func.func @_conv_mm_kernel(%arg0: i32, %arg1: memref<8x36xbf16, #tpu.memory_space<vmem>>, %arg2: memref<36x128xbf16, #tpu.memory_space<vmem>>, %arg3: memref<8x128xf32, #tpu.memory_space<vmem>>) attributes {dimension_semantics = [#tpu.dimension_semantics<parallel>], iteration_bounds = array<i64: 1>, scalar_prefetch = 0 : i64, scratch_operands = 0 : i64, tpu.core_type = #tpu.core_type<tc>, window_params = [{pipeline_mode = #tpu.pipeline_mode<synchronous>, transform_indices = @transform_0, window_bounds = array<i64: 8, 36>}, {transform_indices = @transform_1, window_bounds = array<i64: 36, 128>}, {transform_indices = @transform_2, window_bounds = array<i64: 8, 128>}]} {
    %c0 = arith.constant 0 : index
    %c0_0 = arith.constant 0 : index
    %0 = vector.load %arg1[%c0, %c0_0] : memref<8x36xbf16, #tpu.memory_space<vmem>>, vector<8x36xbf16>
    %c0_1 = arith.constant 0 : index
    %c0_2 = arith.constant 0 : index
    %1 = vector.load %arg2[%c0_1, %c0_2] : memref<36x128xbf16, #tpu.memory_space<vmem>>, vector<36x128xbf16>
    %cst = arith.constant dense<0.000000e+00> : vector<8x128xf32>
    %2 = tpu.matmul %0, %1, %cst {dimension_numbers = #tpu.dot_dimension_numbers<[1], [0], [0], [1], [0, 0, 1, 1], [], []>} : vector<8x36xbf16>, vector<36x128xbf16>, vector<8x128xf32> -> vector<8x128xf32>
    %cst_3 = arith.constant 0.000000e+00 : f32
    %3 = vector.broadcast %cst_3 : f32 to vector<8x128xf32>
    %4 = arith.cmpf oge, %2, %3 : vector<8x128xf32>
    %cst_4 = arith.constant 2.000000e-01 : f32
    %5 = vector.broadcast %cst_4 : f32 to vector<8x128xf32>
    %6 = arith.mulf %5, %2 : vector<8x128xf32>
    %7 = arith.select %4, %2, %6 : vector<8x128xi1>, vector<8x128xf32>
    %c0_5 = arith.constant 0 : index
    %c0_6 = arith.constant 0 : index
    %8 = vector.load %arg3[%c0_5, %c0_6] : memref<8x128xf32, #tpu.memory_space<vmem>>, vector<8x128xf32>
    tpu.vector_store %arg3[%c0_5, %c0_6], %7 {strides = array<i32>} : memref<8x128xf32, #tpu.memory_space<vmem>>, vector<8x128xf32>,
    return
  }
  func.func @transform_0(%arg0: i32) -> (i32, i32) {
    %c0_i32 = arith.constant 0 : i32
    %c0_i32_0 = arith.constant 0 : i32
    %c0_i32_1 = arith.constant 0 : i32
    return %c0_i32, %c0_i32_0 : i32, i32
  }
  func.func @transform_1(%arg0: i32) -> (i32, i32) {
    %c0_i32 = arith.constant 0 : i32
    %c0_i32_0 = arith.constant 0 : i32
    return %c0_i32, %arg0 : i32, i32
  }
  func.func @transform_2(%arg0: i32) -> (i32, i32) {
    %c0_i32 = arith.constant 0 : i32
    %c0_i32_0 = arith.constant 0 : i32
    return %c0_i32, %arg0 : i32, i32
  }
}

module attributes {stable_mosaic.version = 11 : i64} {
  func.func @_conv_mm_kernel(%arg0: i32, %arg1: memref<16x72xbf16, #tpu.memory_space<vmem>>, %arg2: memref<72x128xbf16, #tpu.memory_space<vmem>>, %arg3: memref<16x128xf32, #tpu.memory_space<vmem>>) attributes {dimension_semantics = [#tpu.dimension_semantics<parallel>], iteration_bounds = array<i64: 1>, scalar_prefetch = 0 : i64, scratch_operands = 0 : i64, tpu.core_type = #tpu.core_type<tc>, window_params = [{pipeline_mode = #tpu.pipeline_mode<synchronous>, transform_indices = @transform_0, window_bounds = array<i64: 16, 72>}, {transform_indices = @transform_1, window_bounds = array<i64: 72, 128>}, {transform_indices = @transform_2, window_bounds = array<i64: 16, 128>}]} {
    %c0 = arith.constant 0 : index
    %c0_0 = arith.constant 0 : index
    %0 = vector.load %arg1[%c0, %c0_0] : memref<16x72xbf16, #tpu.memory_space<vmem>>, vector<16x72xbf16>
    %c0_1 = arith.constant 0 : index
    %c0_2 = arith.constant 0 : index
    %1 = vector.load %arg2[%c0_1, %c0_2] : memref<72x128xbf16, #tpu.memory_space<vmem>>, vector<72x128xbf16>
    %cst = arith.constant dense<0.000000e+00> : vector<16x128xf32>
    %2 = tpu.matmul %0, %1, %cst {dimension_numbers = #tpu.dot_dimension_numbers<[1], [0], [0], [1], [0, 0, 1, 1], [], []>} : vector<16x72xbf16>, vector<72x128xbf16>, vector<16x128xf32> -> vector<16x128xf32>
    %cst_3 = arith.constant 0.000000e+00 : f32
    %3 = vector.broadcast %cst_3 : f32 to vector<16x128xf32>
    %4 = arith.cmpf oge, %2, %3 : vector<16x128xf32>
    %cst_4 = arith.constant 2.000000e-01 : f32
    %5 = vector.broadcast %cst_4 : f32 to vector<16x128xf32>
    %6 = arith.mulf %5, %2 : vector<16x128xf32>
    %7 = arith.select %4, %2, %6 : vector<16x128xi1>, vector<16x128xf32>
    %c0_5 = arith.constant 0 : index
    %c0_6 = arith.constant 0 : index
    %8 = vector.load %arg3[%c0_5, %c0_6] : memref<16x128xf32, #tpu.memory_space<vmem>>, vector<16x128xf32>
    tpu.vector_store %arg3[%c0_5, %c0_6], %7 {strides = array<i32>} : memref<16x128xf32, #tpu.memory_space<vmem>>, vector<16x128xf32>,
    return
  }
  func.func @transform_0(%arg0: i32) -> (i32, i32) {
    %c0_i32 = arith.constant 0 : i32
    %c0_i32_0 = arith.constant 0 : i32
    %c0_i32_1 = arith.constant 0 : i32
    return %c0_i32, %c0_i32_0 : i32, i32
  }
  func.func @transform_1(%arg0: i32) -> (i32, i32) {
    %c0_i32 = arith.constant 0 : i32
    %c0_i32_0 = arith.constant 0 : i32
    return %c0_i32, %arg0 : i32, i32
  }
  func.func @transform_2(%arg0: i32) -> (i32, i32) {
    %c0_i32 = arith.constant 0 : i32
    %c0_i32_0 = arith.constant 0 : i32
    return %c0_i32, %arg0 : i32, i32
  }
}

module attributes {stable_mosaic.version = 11 : i64} {
  func.func @_batchnorm_kernel(%arg0: i32, %arg1: memref<16x32xf32, #tpu.memory_space<vmem>>, %arg2: memref<16x32xf32, #tpu.memory_space<vmem>>) attributes {dimension_semantics = [#tpu.dimension_semantics<arbitrary>], iteration_bounds = array<i64: 1>, scalar_prefetch = 0 : i64, scratch_operands = 0 : i64, tpu.core_type = #tpu.core_type<tc>, window_params = [{pipeline_mode = #tpu.pipeline_mode<synchronous>, transform_indices = @transform_0, window_bounds = array<i64: 16, 32>}, {pipeline_mode = #tpu.pipeline_mode<synchronous>, transform_indices = @transform_1, window_bounds = array<i64: 16, 32>}]} {
    %c0 = arith.constant 0 : index
    %c0_0 = arith.constant 0 : index
    %0 = vector.load %arg1[%c0, %c0_0] : memref<16x32xf32, #tpu.memory_space<vmem>>, vector<16x32xf32>
    %cst = arith.constant dense<0.000000e+00> : vector<16xf32>
    %1 = vector.multi_reduction <add>, %0, %cst [1] : vector<16x32xf32> to vector<16xf32>
    %2 = vector.shape_cast %1 : vector<16xf32> to vector<16x1xf32>
    %3 = arith.mulf %0, %0 : vector<16x32xf32>
    %cst_1 = arith.constant dense<0.000000e+00> : vector<16xf32>
    %4 = vector.multi_reduction <add>, %3, %cst_1 [1] : vector<16x32xf32> to vector<16xf32>
    %5 = vector.shape_cast %4 : vector<16xf32> to vector<16x1xf32>
    %cst_2 = arith.constant 3.125000e-02 : f32
    %6 = vector.broadcast %cst_2 : f32 to vector<16x1xf32>
    %7 = arith.mulf %2, %6 : vector<16x1xf32>
    %cst_3 = arith.constant 3.125000e-02 : f32
    %8 = vector.broadcast %cst_3 : f32 to vector<16x1xf32>
    %9 = arith.mulf %5, %8 : vector<16x1xf32>
    %10 = arith.mulf %7, %7 : vector<16x1xf32>
    %11 = arith.subf %9, %10 : vector<16x1xf32>
    %cst_4 = arith.constant 0.000000e+00 : f32
    %12 = vector.broadcast %cst_4 : f32 to vector<16x1xf32>
    %13 = arith.maximumf %11, %12 : vector<16x1xf32>
    %14 = vector.broadcast %7 : vector<16x1xf32> to vector<16x32xf32>
    %15 = arith.subf %0, %14 : vector<16x32xf32>
    %cst_5 = arith.constant 9.99999974E-6 : f32
    %16 = vector.broadcast %cst_5 : f32 to vector<16x1xf32>
    %17 = arith.addf %13, %16 : vector<16x1xf32>
    %18 = math.rsqrt %17 : vector<16x1xf32>
    %19 = vector.broadcast %18 : vector<16x1xf32> to vector<16x32xf32>
    %20 = arith.mulf %15, %19 : vector<16x32xf32>
    %c0_6 = arith.constant 0 : index
    %c0_7 = arith.constant 0 : index
    %21 = vector.load %arg2[%c0_6, %c0_7] : memref<16x32xf32, #tpu.memory_space<vmem>>, vector<16x32xf32>
    tpu.vector_store %arg2[%c0_6, %c0_7], %20 {strides = array<i32>} : memref<16x32xf32, #tpu.memory_space<vmem>>, vector<16x32xf32>,
    return
  }
  func.func @transform_0(%arg0: i32) -> (i32, i32) {
    %c0_i32 = arith.constant 0 : i32
    %c0_i32_0 = arith.constant 0 : i32
    %c0_i32_1 = arith.constant 0 : i32
    return %c0_i32, %c0_i32_0 : i32, i32
  }
  func.func @transform_1(%arg0: i32) -> (i32, i32) {
    %c0_i32 = arith.constant 0 : i32
    %c0_i32_0 = arith.constant 0 : i32
    %c0_i32_1 = arith.constant 0 : i32
    return %c0_i32, %c0_i32_0 : i32, i32
  }
}

module attributes {stable_mosaic.version = 11 : i64} {
  func.func @_conv_mm_kernel(%arg0: i32, %arg1: memref<1x144xbf16, #tpu.memory_space<vmem>>, %arg2: memref<144x128xbf16, #tpu.memory_space<vmem>>, %arg3: memref<1x128xf32, #tpu.memory_space<vmem>>) attributes {dimension_semantics = [#tpu.dimension_semantics<parallel>], iteration_bounds = array<i64: 1>, scalar_prefetch = 0 : i64, scratch_operands = 0 : i64, tpu.core_type = #tpu.core_type<tc>, window_params = [{pipeline_mode = #tpu.pipeline_mode<synchronous>, transform_indices = @transform_0, window_bounds = array<i64: 1, 144>}, {transform_indices = @transform_1, window_bounds = array<i64: 144, 128>}, {transform_indices = @transform_2, window_bounds = array<i64: 1, 128>}]} {
    %c0 = arith.constant 0 : index
    %c0_0 = arith.constant 0 : index
    %0 = vector.load %arg1[%c0, %c0_0] : memref<1x144xbf16, #tpu.memory_space<vmem>>, vector<1x144xbf16>
    %c0_1 = arith.constant 0 : index
    %c0_2 = arith.constant 0 : index
    %1 = vector.load %arg2[%c0_1, %c0_2] : memref<144x128xbf16, #tpu.memory_space<vmem>>, vector<144x128xbf16>
    %cst = arith.constant dense<0.000000e+00> : vector<1x128xf32>
    %2 = tpu.matmul %0, %1, %cst {dimension_numbers = #tpu.dot_dimension_numbers<[1], [0], [0], [1], [0, 0, 1, 1], [], []>} : vector<1x144xbf16>, vector<144x128xbf16>, vector<1x128xf32> -> vector<1x128xf32>
    %cst_3 = arith.constant 0.000000e+00 : f32
    %3 = vector.broadcast %cst_3 : f32 to vector<1x128xf32>
    %4 = arith.cmpf oge, %2, %3 : vector<1x128xf32>
    %cst_4 = arith.constant 0.000000e+00 : f32
    %5 = vector.broadcast %cst_4 : f32 to vector<1x128xf32>
    %6 = arith.subf %5, %2 : vector<1x128xf32>
    %7 = arith.select %4, %6, %2 : vector<1x128xi1>, vector<1x128xf32>
    %8 = math.exp %7 : vector<1x128xf32>
    %cst_5 = arith.constant 1.000000e+00 : f32
    %9 = vector.broadcast %cst_5 : f32 to vector<1x128xf32>
    %10 = arith.addf %9, %8 : vector<1x128xf32>
    %cst_6 = arith.constant 1.000000e+00 : f32
    %11 = vector.broadcast %cst_6 : f32 to vector<1x128xf32>
    %12 = arith.divf %11, %10 : vector<1x128xf32>
    %cst_7 = arith.constant 0.000000e+00 : f32
    %13 = vector.broadcast %cst_7 : f32 to vector<1x128xf32>
    %14 = arith.cmpf oge, %2, %13 : vector<1x128xf32>
    %15 = arith.mulf %8, %12 : vector<1x128xf32>
    %16 = arith.select %14, %12, %15 : vector<1x128xi1>, vector<1x128xf32>
    %c0_8 = arith.constant 0 : index
    %c0_9 = arith.constant 0 : index
    %17 = vector.load %arg3[%c0_8, %c0_9] : memref<1x128xf32, #tpu.memory_space<vmem>>, vector<1x128xf32>
    tpu.vector_store %arg3[%c0_8, %c0_9], %16 {strides = array<i32>} : memref<1x128xf32, #tpu.memory_space<vmem>>, vector<1x128xf32>,
    return
  }
  func.func @transform_0(%arg0: i32) -> (i32, i32) {
    %c0_i32 = arith.constant 0 : i32
    %c0_i32_0 = arith.constant 0 : i32
    %c0_i32_1 = arith.constant 0 : i32
    return %c0_i32, %c0_i32_0 : i32, i32
  }
  func.func @transform_1(%arg0: i32) -> (i32, i32) {
    %c0_i32 = arith.constant 0 : i32
    %c0_i32_0 = arith.constant 0 : i32
    return %c0_i32, %arg0 : i32, i32
  }
  func.func @transform_2(%arg0: i32) -> (i32, i32) {
    %c0_i32 = arith.constant 0 : i32
    %c0_i32_0 = arith.constant 0 : i32
    return %c0_i32, %arg0 : i32, i32
  }
}

</mosaic_0001>

<llo_original>
// kernel: discriminator_forward.4
$region0: #{discriminator_forward.4}
  #allocation0 [shape = 'u32[]', space=smem, size = 0x4, offset = 0x4, fixed_abs, tag = 'smem constant byte address 0x4 - core index']
  #allocation1 [shape = 'u32[144,128]{1,0:T(1,128)}', space=vmem, size = 0x12000, scoped, tag = 'internal scratch']
  %s0 = inlined_call_operand.vmem [shape: bf16[8,36], index: 0, kind: input, shape index: {}]
  %s1 = inlined_call_operand.vmem [shape: bf16[36,128], index: 1, kind: input, shape index: {}]
  %s2 = inlined_call_operand.vmem [shape: f32[8,128], index: 2, kind: output, shape index: {}]
  %s3 = sld [smem:[#allocation0]]
  $region18: #{discriminator_forward.4} parent=0
    _
  %s5 = ssub.s32 1, %s3
  %s6 = scalar_select 0, %s5, %s3
  // Predicated region
  $region2: #{discriminator_forward.4} parent=0 // pred_check
    _
  $region3: #{discriminator_forward.4} parent=0 // pred_check_branch
    %8 = sbr.rel (0) target = $region5
  $region4: #{discriminator_forward.4} parent=0 // pred_region
    _
  $region5: #{discriminator_forward.4} parent=0 // pred_fallthru
    _
  // Predicated region
  $region6: #{discriminator_forward.4} parent=0 // pred_check
    _
  $region7: #{discriminator_forward.4} parent=0 // pred_check_branch
    %10 = sbr.rel (0) target = $region9
  $region8: #{discriminator_forward.4} parent=0 // pred_region
    _
  $region9: #{discriminator_forward.4} parent=0 // pred_fallthru
    _
  %v12 = vld [vmem:[%s0] sm:$0xf]
  %v13 = vld [vmem:[%s1] sm:$0xf]
  %v14 = vld [vmem:[%s1 + $0x4] sm:$0xf]
  %v15 = vld [vmem:[%s1 + $0x8] sm:$0xf]
  %v16 = vld [vmem:[%s1 + $0xc] sm:$0xf]
  %v17 = vld [vmem:[%s1 + $0x10] sm:$0x3]
  %v23 = vunpack.c.l.b16 %v13
  %v24 = vunpack.c.l.b16 %v14
  %v25 = vunpack.c.l.b16 %v15
  %v26 = vunpack.c.l.b16 %v16
  %v27 = vunpack.c.l.b16 %v17
  %v28 = vpack.c.b16 %v24, %v23
  %v29 = vpack.c.b16 %v26, %v25
  %v30 = vpack.c.b16 %v27, %v27
  %vm33 = vcmask 293888
  %v35 = vsel %vm33, %v12, 0
  %vm37 = vcmask 1041408
  %v39 = vsel %vm37, %v30, 0
  %41 = vmatprep.subr.bf16.mxu0 0
  %42 = vmatpush1.bf16.msra.mxu0 %v28
  %43 = vmatprep.subr.bf16.mxu0 0
  %44 = vmatpush1.bf16.msra.mxu0 %v29
  %45 = vmatprep.subr.bf16.mxu0 0
  %46 = vmatpush1.bf16.msra.mxu0 %v39
  %47 = vmatprep.subr.bf16.mxu0 0
  %48 = vmatpush1.bf16.msra.mxu0 0
  %49 = vmatprep.subr.bf16.mxu0 0
  %50 = vmatpush1.bf16.msra.mxu0 0
  %51 = vmatprep.subr.bf16.mxu0 0
  %52 = vmatpush1.bf16.msra.mxu0 0
  %53 = vmatprep.subr.bf16.mxu0 0
  %54 = vmatpush1.bf16.msra.mxu0 0
  %55 = vmatprep.subr.bf16.mxu0 0
  %56 = vmatpush1.bf16.msra.mxu0 0
  %57 = vmatprep.subr.bf16.mxu0 0
  %58 = vmatpush1.bf16.msra.mxu0 0
  %59 = vmatprep.subr.bf16.mxu0 0
  %60 = vmatpush1.bf16.msra.mxu0 0
  %61 = vmatprep.subr.bf16.mxu0 0
  %62 = vmatpush1.bf16.msra.mxu0 0
  %63 = vmatprep.subr.bf16.mxu0 0
  %64 = vmatpush1.bf16.msra.mxu0 0
  %65 = vmatprep.subr.bf16.mxu0 0
  %66 = vmatpush1.bf16.msra.mxu0 0
  %67 = vmatprep.subr.bf16.mxu0 0
  %68 = vmatpush1.bf16.msra.mxu0 0
  %69 = vmatprep.subr.bf16.mxu0 0
  %70 = vmatpush1.bf16.msra.mxu0 0
  %71 = vmatprep.subr.bf16.mxu0 0
  %72 = vmatpush1.bf16.msra.mxu0 0
  %73 = vmatprep.mubr.bf16.mxu0 0
  %74 = vmatmul.mubr.bf16.gmra.mrb[0].mxu0 %v35
  %v75 = vpop.f32.mrb[0].mxu0
  %v76 = vadd.f32 0.0, %v75
  %v77 = vpop.f32.mrb[0].mxu0
  %v78 = vpop.f32.mrb[0].mxu0
  %v79 = vpop.f32.mrb[0].mxu0
  %80 = vdwg.mxu0
  %vm81 = vcmp.ge.f32.partialorder %v76, 0.0
  %v82 = vmul.f32 %v76, 0.2
  %v83 = vsel %vm81, %v76, %v82
  %84 = vst [vmem:[%s2] sm:$0xff] %v83
  // Predicated region
  $region10: #{discriminator_forward.4} parent=0 // pred_check
    _
  $region11: #{discriminator_forward.4} parent=0 // pred_check_branch
    %86 = sbr.rel (0) target = $region13
  $region12: #{discriminator_forward.4} parent=0 // pred_region
    _
  $region13: #{discriminator_forward.4} parent=0 // pred_fallthru
    _
  // Predicated region
  $region14: #{discriminator_forward.4} parent=0 // pred_check
    _
  $region15: #{discriminator_forward.4} parent=0 // pred_check_branch
    %88 = sbr.rel (0) target = $region17
  $region16: #{discriminator_forward.4} parent=0 // pred_region
    _
  $region17: #{discriminator_forward.4} parent=0 // pred_fallthru
    _

// kernel: discriminator_forward.5
$region0: #{discriminator_forward.5}
  #allocation0 [shape = 'u32[]', space=smem, size = 0x4, offset = 0x4, fixed_abs, tag = 'smem constant byte address 0x4 - core index']
  #allocation1 [shape = 'u32[144,128]{1,0:T(1,128)}', space=vmem, size = 0x12000, scoped, tag = 'internal scratch']
  %s0 = inlined_call_operand.vmem [shape: bf16[16,72], index: 0, kind: input, shape index: {}]
  %s1 = inlined_call_operand.vmem [shape: bf16[72,128], index: 1, kind: input, shape index: {}]
  %s2 = inlined_call_operand.vmem [shape: f32[16,128], index: 2, kind: output, shape index: {}]
  %s3 = sld [smem:[#allocation0]]
  $region18: #{discriminator_forward.5} parent=0
    _
  %s5 = ssub.s32 1, %s3
  %s6 = scalar_select 0, %s5, %s3
  // Predicated region
  $region2: #{discriminator_forward.5} parent=0 // pred_check
    _
  $region3: #{discriminator_forward.5} parent=0 // pred_check_branch
    %8 = sbr.rel (0) target = $region5
  $region4: #{discriminator_forward.5} parent=0 // pred_region
    _
  $region5: #{discriminator_forward.5} parent=0 // pred_fallthru
    _
  // Predicated region
  $region6: #{discriminator_forward.5} parent=0 // pred_check
    _
  $region7: #{discriminator_forward.5} parent=0 // pred_check_branch
    %10 = sbr.rel (0) target = $region9
  $region8: #{discriminator_forward.5} parent=0 // pred_region
    _
  $region9: #{discriminator_forward.5} parent=0 // pred_fallthru
    _
  %v12 = vld [vmem:[%s0] sm:$0xf]
  %v13 = vld [vmem:[%s0 + $0x4] sm:$0xf]
  %v14 = vld [vmem:[%s1] sm:$0xf]
  %v15 = vld [vmem:[%s1 + $0x4] sm:$0xf]
  %v16 = vld [vmem:[%s1 + $0x8] sm:$0xf]
  %v17 = vld [vmem:[%s1 + $0xc] sm:$0xf]
  %v18 = vld [vmem:[%s1 + $0x10] sm:$0xf]
  %v19 = vld [vmem:[%s1 + $0x14] sm:$0xf]
  %v20 = vld [vmem:[%s1 + $0x18] sm:$0xf]
  %v21 = vld [vmem:[%s1 + $0x1c] sm:$0xf]
  %v22 = vld [vmem:[%s1 + $0x20] sm:$0xf]
  %v25 = vunpack.c.l.b16 %v12
  %v26 = vunpack.c.l.b16 %v13
  %v27 = vpack.c.b16 %v26, %v25
  %v37 = vunpack.c.l.b16 %v14
  %v38 = vunpack.c.l.b16 %v15
  %v39 = vunpack.c.l.b16 %v16
  %v40 = vunpack.c.l.b16 %v17
  %v41 = vunpack.c.l.b16 %v18
  %v42 = vunpack.c.l.b16 %v19
  %v43 = vunpack.c.l.b16 %v20
  %v44 = vunpack.c.l.b16 %v21
  %v45 = vunpack.c.l.b16 %v22
  %v46 = vpack.c.b16 %v38, %v37
  %v47 = vpack.c.b16 %v40, %v39
  %v48 = vpack.c.b16 %v42, %v41
  %v49 = vpack.c.b16 %v44, %v43
  %v50 = vpack.c.b16 %v45, %v45
  %vm55 = vcmask 588800
  %v57 = vsel %vm55, %v27, 0
  %vm59 = vcmask 1043456
  %v61 = vsel %vm59, %v50, 0
  %63 = vmatprep.subr.bf16.mxu0 0
  %64 = vmatpush1.bf16.msra.mxu0 %v46
  %65 = vmatprep.subr.bf16.mxu0 0
  %66 = vmatpush1.bf16.msra.mxu0 %v47
  %67 = vmatprep.subr.bf16.mxu0 0
  %68 = vmatpush1.bf16.msra.mxu0 %v48
  %69 = vmatprep.subr.bf16.mxu0 0
  %70 = vmatpush1.bf16.msra.mxu0 %v49
  %71 = vmatprep.subr.bf16.mxu0 0
  %72 = vmatpush1.bf16.msra.mxu0 %v61
  %73 = vmatprep.subr.bf16.mxu0 0
  %74 = vmatpush1.bf16.msra.mxu0 0
  %75 = vmatprep.subr.bf16.mxu0 0
  %76 = vmatpush1.bf16.msra.mxu0 0
  %77 = vmatprep.subr.bf16.mxu0 0
  %78 = vmatpush1.bf16.msra.mxu0 0
  %79 = vmatprep.subr.bf16.mxu0 0
  %80 = vmatpush1.bf16.msra.mxu0 0
  %81 = vmatprep.subr.bf16.mxu0 0
  %82 = vmatpush1.bf16.msra.mxu0 0
  %83 = vmatprep.subr.bf16.mxu0 0
  %84 = vmatpush1.bf16.msra.mxu0 0
  %85 = vmatprep.subr.bf16.mxu0 0
  %86 = vmatpush1.bf16.msra.mxu0 0
  %87 = vmatprep.subr.bf16.mxu0 0
  %88 = vmatpush1.bf16.msra.mxu0 0
  %89 = vmatprep.subr.bf16.mxu0 0
  %90 = vmatpush1.bf16.msra.mxu0 0
  %91 = vmatprep.subr.bf16.mxu0 0
  %92 = vmatpush1.bf16.msra.mxu0 0
  %93 = vmatprep.subr.bf16.mxu0 0
  %94 = vmatpush1.bf16.msra.mxu0 0
  %95 = vmatprep.mubr.bf16.mxu0 0
  %96 = vmatmul.mubr.bf16.gmra.mrb[0].mxu0 %v57
  %v97 = vpop.f32.mrb[0].mxu0
  %v98 = vadd.f32 0.0, %v97
  %v99 = vpop.f32.mrb[0].mxu0
  %v100 = vpop.f32.mrb[0].mxu0
  %v101 = vadd.f32 0.0, %v100
  %v102 = vpop.f32.mrb[0].mxu0
  %103 = vdwg.mxu0
  %vm104 = vcmp.ge.f32.partialorder %v98, 0.0
  %vm105 = vcmp.ge.f32.partialorder %v101, 0.0
  %v106 = vmul.f32 %v98, 0.2
  %v107 = vmul.f32 %v101, 0.2
  %v108 = vsel %vm104, %v98, %v106
  %v109 = vsel %vm105, %v101, %v107
  %110 = vst [vmem:[%s2] sm:$0xff] %v108
  %111 = vst [vmem:[%s2 + $0x8] sm:$0xff] %v109
  // Predicated region
  $region10: #{discriminator_forward.5} parent=0 // pred_check
    _
  $region11: #{discriminator_forward.5} parent=0 // pred_check_branch
    %113 = sbr.rel (0) target = $region13
  $region12: #{discriminator_forward.5} parent=0 // pred_region
    _
  $region13: #{discriminator_forward.5} parent=0 // pred_fallthru
    _
  // Predicated region
  $region14: #{discriminator_forward.5} parent=0 // pred_check
    _
  $region15: #{discriminator_forward.5} parent=0 // pred_check_branch
    %115 = sbr.rel (0) target = $region17
  $region16: #{discriminator_forward.5} parent=0 // pred_region
    _
  $region17: #{discriminator_forward.5} parent=0 // pred_fallthru
    _

// kernel: discriminator_forward.6
$region0: #{discriminator_forward.6}
  #allocation0 [shape = 'u32[]', space=smem, size = 0x4, offset = 0x4, fixed_abs, tag = 'smem constant byte address 0x4 - core index']
  #allocation1 [shape = 'u32[144,128]{1,0:T(1,128)}', space=vmem, size = 0x12000, scoped, tag = 'internal scratch']
  %s0 = inlined_call_operand.vmem [shape: f32[16,32], index: 0, kind: input, shape index: {}]
  %s1 = inlined_call_operand.vmem [shape: f32[16,32], index: 1, kind: output, shape index: {}]
  %s2 = sld [smem:[#allocation0]]
  $region14: #{discriminator_forward.6} parent=0
    _
  %s4 = ssub.s32 1, %s2
  %s5 = scalar_select 0, %s4, %s2
  // Predicated region
  $region2: #{discriminator_forward.6} parent=0 // pred_check
    _
  $region3: #{discriminator_forward.6} parent=0 // pred_check_branch
    %7 = sbr.rel (0) target = $region5
  $region4: #{discriminator_forward.6} parent=0 // pred_region
    _
  $region5: #{discriminator_forward.6} parent=0 // pred_fallthru
    _
  %v8 = vld [vmem:[%s0] sm:$0xff]
  %v9 = vld [vmem:[%s0 + $0x8] sm:$0xff]
  %vm10 = vcmask 261120
  %v11 = vsel %vm10, %v8, 0.0
  %12 = vadd.xlane.f32.xlu0 %v11
  %v13 = vpop.xlane.xlu0 %12
  %v14 = vsel %vm10, %v9, 0.0
  %15 = vadd.xlane.f32.xlu0 %v14
  %v16 = vpop.xlane.xlu0 %15
  %v17 = vmul.f32 %v8, %v8
  %v18 = vmul.f32 %v9, %v9
  %v19 = vsel %vm10, %v17, 0.0
  %20 = vadd.xlane.f32.xlu0 %v19
  %v21 = vpop.xlane.xlu0 %20
  %v22 = vsel %vm10, %v18, 0.0
  %23 = vadd.xlane.f32.xlu0 %v22
  %v24 = vpop.xlane.xlu0 %23
  %v25 = vmul.f32 %v13, 0.03125
  %v26 = vmul.f32 %v16, 0.03125
  %v27 = vmul.f32 %v21, 0.03125
  %v28 = vmul.f32 %v24, 0.03125
  %v29 = vmul.f32 %v25, %v25
  %v30 = vmul.f32 %v26, %v26
  %v31 = vsub.f32 %v27, %v29
  %v32 = vsub.f32 %v28, %v30
  %v33 = vmax.f32 %v31, 0.0
  %v34 = vmax.f32 %v32, 0.0
  %v35 = vsub.f32 %v8, %v25
  %v36 = vsub.f32 %v9, %v26
  %v37 = vadd.f32 %v33, 1e-05
  %v38 = vadd.f32 %v34, 1e-05
  %v39 = vrsqrt.pop %v37
  %v40 = vrsqrt.pop %v38
  %v41 = vmul.f32 %v35, %v39
  %v42 = vmul.f32 %v36, %v40
  %43 = vst.msk [vmem:[%s1] sm:$0xff] %vm10, %v41
  %44 = vst.msk [vmem:[%s1 + $0x8] sm:$0xff] %vm10, %v42
  // Predicated region
  $region6: #{discriminator_forward.6} parent=0 // pred_check
    _
  $region7: #{discriminator_forward.6} parent=0 // pred_check_branch
    %46 = sbr.rel (0) target = $region9
  $region8: #{discriminator_forward.6} parent=0 // pred_region
    _
  $region9: #{discriminator_forward.6} parent=0 // pred_fallthru
    _
  // Predicated region
  $region10: #{discriminator_forward.6} parent=0 // pred_check
    _
  $region11: #{discriminator_forward.6} parent=0 // pred_check_branch
    %48 = sbr.rel (0) target = $region13
  $region12: #{discriminator_forward.6} parent=0 // pred_region
    _
  $region13: #{discriminator_forward.6} parent=0 // pred_fallthru
    _

// kernel: discriminator_forward.7
$region0: #{discriminator_forward.7}
  #allocation0 [shape = 'u32[]', space=smem, size = 0x4, offset = 0x4, fixed_abs, tag = 'smem constant byte address 0x4 - core index']
  #allocation1 [shape = 'u32[144,128]{1,0:T(1,128)}', space=vmem, size = 0x12000, scoped, tag = 'internal scratch']
  %s0 = inlined_call_operand.vmem [shape: bf16[1,144], index: 0, kind: input, shape index: {}]
  %s1 = inlined_call_operand.vmem [shape: bf16[144,128], index: 1, kind: input, shape index: {}]
  %s2 = inlined_call_operand.vmem [shape: f32[1,128], index: 2, kind: output, shape index: {}]
  %s3 = sld [smem:[#allocation0]]
  $region18: #{discriminator_forward.7} parent=0
    _
  %s5 = ssub.s32 1, %s3
  %s6 = scalar_select 0, %s5, %s3
  // Predicated region
  $region2: #{discriminator_forward.7} parent=0 // pred_check
    _
  $region3: #{discriminator_forward.7} parent=0 // pred_check_branch
    %8 = sbr.rel (0) target = $region5
  $region4: #{discriminator_forward.7} parent=0 // pred_region
    _
  $region5: #{discriminator_forward.7} parent=0 // pred_fallthru
    _
  // Predicated region
  $region6: #{discriminator_forward.7} parent=0 // pred_check
    _
  $region7: #{discriminator_forward.7} parent=0 // pred_check_branch
    %10 = sbr.rel (0) target = $region9
  $region8: #{discriminator_forward.7} parent=0 // pred_region
    _
  $region9: #{discriminator_forward.7} parent=0 // pred_fallthru
    _
  %v12 = vld [vmem:[%s0] sm:$0x3]
  %v13 = vld [vmem:[%s1] sm:$0xf]
  %v14 = vld [vmem:[%s1 + $0x4] sm:$0xf]
  %v15 = vld [vmem:[%s1 + $0x8] sm:$0xf]
  %v16 = vld [vmem:[%s1 + $0xc] sm:$0xf]
  %v17 = vld [vmem:[%s1 + $0x10] sm:$0xf]
  %v18 = vld [vmem:[%s1 + $0x14] sm:$0xf]
  %v19 = vld [vmem:[%s1 + $0x18] sm:$0xf]
  %v20 = vld [vmem:[%s1 + $0x1c] sm:$0xf]
  %v21 = vld [vmem:[%s1 + $0x20] sm:$0xf]
  %v22 = vld [vmem:[%s1 + $0x24] sm:$0xf]
  %v23 = vld [vmem:[%s1 + $0x28] sm:$0xf]
  %v24 = vld [vmem:[%s1 + $0x2c] sm:$0xf]
  %v25 = vld [vmem:[%s1 + $0x30] sm:$0xf]
  %v26 = vld [vmem:[%s1 + $0x34] sm:$0xf]
  %v27 = vld [vmem:[%s1 + $0x38] sm:$0xf]
  %v28 = vld [vmem:[%s1 + $0x3c] sm:$0xf]
  %v29 = vld [vmem:[%s1 + $0x40] sm:$0xf]
  %v30 = vld [vmem:[%s1 + $0x44] sm:$0xf]
  %v33 = vunpack.c.l.s4 1966171168
  %v34 = vunpack.c.0.s8 %v33
  %v35 = vlaneseq
  %v36 = vshrl.u32 %v35, 7
  %v37 = vsub.s32 %v34, %v36
  %v38 = vrot.slane %v12, %v37
  %v39 = vcombine.high %v38, %v38
  %v41 = vunpack.c.l.s4 1966171168
  %v42 = vunpack.c.0.s8 %v41
  %v43 = vlaneseq
  %v44 = vshrl.u32 %v43, 7
  %v45 = vsub.s32 %v42, %v44
  %v46 = vrot.slane %v38, %v45
  %v48 = vunpack.c.l.s4 1966171168
  %v49 = vunpack.c.0.s8 %v48
  %v50 = vlaneseq
  %v51 = vshrl.u32 %v50, 7
  %v52 = vsub.s32 %v49, %v51
  %v53 = vrot.slane %v39, %v52
  %v73 = vunpack.c.l.b16 %v13
  %v74 = vunpack.c.l.b16 %v14
  %v75 = vunpack.c.l.b16 %v15
  %v76 = vunpack.c.l.b16 %v16
  %v77 = vunpack.c.l.b16 %v17
  %v78 = vunpack.c.l.b16 %v18
  %v79 = vunpack.c.l.b16 %v19
  %v80 = vunpack.c.l.b16 %v20
  %v81 = vunpack.c.l.b16 %v21
  %v82 = vunpack.c.l.b16 %v22
  %v83 = vunpack.c.l.b16 %v23
  %v84 = vunpack.c.l.b16 %v24
  %v85 = vunpack.c.l.b16 %v25
  %v86 = vunpack.c.l.b16 %v26
  %v87 = vunpack.c.l.b16 %v27
  %v88 = vunpack.c.l.b16 %v28
  %v89 = vunpack.c.l.b16 %v29
  %v90 = vunpack.c.l.b16 %v30
  %v91 = vpack.c.b16 %v74, %v73
  %v92 = vpack.c.b16 %v76, %v75
  %v93 = vpack.c.b16 %v78, %v77
  %v94 = vpack.c.b16 %v80, %v79
  %v95 = vpack.c.b16 %v82, %v81
  %v96 = vpack.c.b16 %v84, %v83
  %v97 = vpack.c.b16 %v86, %v85
  %v98 = vpack.c.b16 %v88, %v87
  %v99 = vpack.c.b16 %v90, %v89
  %vm109 = vcmask 130048
  %v111 = vsel %vm109, %v53, 0
  %113 = vmatprep.subr.bf16.mxu0 0
  %114 = vmatpush1.bf16.msra.mxu0 %v91
  %115 = vmatprep.subr.bf16.mxu0 0
  %116 = vmatpush1.bf16.msra.mxu0 %v92
  %117 = vmatprep.subr.bf16.mxu0 0
  %118 = vmatpush1.bf16.msra.mxu0 %v93
  %119 = vmatprep.subr.bf16.mxu0 0
  %120 = vmatpush1.bf16.msra.mxu0 %v94
  %121 = vmatprep.subr.bf16.mxu0 0
  %122 = vmatpush1.bf16.msra.mxu0 %v95
  %123 = vmatprep.subr.bf16.mxu0 0
  %124 = vmatpush1.bf16.msra.mxu0 %v96
  %125 = vmatprep.subr.bf16.mxu0 0
  %126 = vmatpush1.bf16.msra.mxu0 %v97
  %127 = vmatprep.subr.bf16.mxu0 0
  %128 = vmatpush1.bf16.msra.mxu0 %v98
  %129 = vmatprep.subr.bf16.mxu0 0
  %130 = vmatpush1.bf16.msra.mxu0 %v99
  %131 = vmatprep.subr.bf16.mxu0 0
  %132 = vmatpush1.bf16.msra.mxu0 0
  %133 = vmatprep.subr.bf16.mxu0 0
  %134 = vmatpush1.bf16.msra.mxu0 0
  %135 = vmatprep.subr.bf16.mxu0 0
  %136 = vmatpush1.bf16.msra.mxu0 0
  %137 = vmatprep.subr.bf16.mxu0 0
  %138 = vmatpush1.bf16.msra.mxu0 0
  %139 = vmatprep.subr.bf16.mxu0 0
  %140 = vmatpush1.bf16.msra.mxu0 0
  %141 = vmatprep.subr.bf16.mxu0 0
  %142 = vmatpush1.bf16.msra.mxu0 0
  %143 = vmatprep.subr.bf16.mxu0 0
  %144 = vmatpush1.bf16.msra.mxu0 0
  %145 = vmatprep.mubr.bf16.mxu0 %v111
  %146 = vmatmul.mubr.bf16.gmra.mrb[0].mxu0 %v46
  %v147 = vpop.f32.mrb[0].mxu0
  %v148 = vadd.f32 0.0, %v147
  %v149 = vpop.f32.mrb[0].mxu0
  %v150 = vpop.f32.mrb[0].mxu0
  %v151 = vpop.f32.mrb[0].mxu0
  %152 = vdwg.mxu0
  %vm153 = vcmp.ge.f32.partialorder %v148, 0.0
  %v154 = vsub.f32 0.0, %v148
  %v155 = vsel %vm153, %v154, %v148
  %v156 = vmul.f32 %v155, 1.442695
  %v157 = vpow.pop %v156
  %v158 = vadd.f32 %v157, 1.0
  %v159 = vrcp.pop %v158
  %v160 = vmul.f32 1.0, %v159
  %v161 = vmul.f32 %v157, %v160
  %v162 = vsel %vm153, %v160, %v161
  %163 = vst [vmem:[%s2] sm:$0x1] %v162
  // Predicated region
  $region10: #{discriminator_forward.7} parent=0 // pred_check
    _
  $region11: #{discriminator_forward.7} parent=0 // pred_check_branch
    %165 = sbr.rel (0) target = $region13
  $region12: #{discriminator_forward.7} parent=0 // pred_region
    _
  $region13: #{discriminator_forward.7} parent=0 // pred_fallthru
    _
  // Predicated region
  $region14: #{discriminator_forward.7} parent=0 // pred_check
    _
  $region15: #{discriminator_forward.7} parent=0 // pred_check_branch
    %167 = sbr.rel (0) target = $region17
  $region16: #{discriminator_forward.7} parent=0 // pred_region
    _
  $region17: #{discriminator_forward.7} parent=0 // pred_fallthru
    _

</llo_original>
